<compile_context>
chip_gen: v7x
topology: tpu7x:2x2x1
jax: 0.10.0
libtpu: 0.0.40
codegen_flags: <defaults>
</compile_context>

<pallas_src>
import functools

import jax
import jax.numpy as jnp
from jax.experimental import pallas as pl
from jax.experimental.pallas import tpu as pltpu


def _round_up(x, m):
    return ((x + m - 1) // m) * m


def _fused_mlp_kernel(x_ref, w_ref, b_ref, out_ref, *, n_layers):
    """Fused MLP on one batch tile, everything resident in VMEM / vregs.

    x_ref:   (B_TILE, D_PAD)            zero-padded activations
    w_ref:   (n_layers, D_PAD, D_PAD)   zero-padded weight slab
    b_ref:   (n_layers, B_TILE, D_PAD)  biases pre-broadcast over sublanes
    out_ref: (B_TILE, D_PAD)            head output: [mean | logvar | 0-pad]
    """
    h = x_ref[...]
    for i in range(n_layers):
        h = jnp.dot(h, w_ref[i], preferred_element_type=jnp.float32) + b_ref[i]
        if i != n_layers - 1:
            h = jnp.maximum(h, 0.0)  # ReLU on hidden layers only
    out_ref[...] = h.astype(out_ref.dtype)


@functools.partial(jax.jit, static_argnames=("output_size",))
def net_forward(params, x, output_size):
    """Net.forward: returns (mean, logvar) = split(FFLayers(x), 2, axis=-1).

    params: list of (W, b) with W shaped (in_features, out_features); the last
    layer's out_features == 2 * output_size (mean columns first, then logvar).
    """
    B, input_size = x.shape
    n_layers = len(params)
    widths = [input_size] + [w.shape[1] for (w, _) in params]
    d_pad = _round_up(max(widths), 128)           # uniform lane-dense width
    b_tile = 128 if B > 128 else _round_up(B, 8)  # batch tile (sublane mult.)
    b_pad = _round_up(B, b_tile)
    num_tiles = b_pad // b_tile

    # Pack parameters into two contiguous zero-padded slabs (2 DMAs) and pad x.
    w_slab = jnp.zeros((n_layers, d_pad, d_pad), jnp.float32)
    b_slab = jnp.zeros((n_layers, b_tile, d_pad), jnp.float32)
    for i, (w, b) in enumerate(params):
        din, dout = w.shape
        w_slab = w_slab.at[i, :din, :dout].set(w.astype(jnp.float32))
        b_slab = b_slab.at[i, :, :dout].set(
            jnp.broadcast_to(b.astype(jnp.float32)[None, :], (b_tile, dout)))
    x_pad = jnp.zeros((b_pad, d_pad), jnp.float32).at[:B, :input_size].set(
        x.astype(jnp.float32))

    out = pl.pallas_call(
        functools.partial(_fused_mlp_kernel, n_layers=n_layers),
        out_shape=jax.ShapeDtypeStruct((b_pad, d_pad), x.dtype),
        grid_spec=pltpu.PrefetchScalarGridSpec(
            num_scalar_prefetch=0,
            grid=(num_tiles,),
            in_specs=[
                pl.BlockSpec((b_tile, d_pad), lambda t: (t, 0)),
                pl.BlockSpec((n_layers, d_pad, d_pad), lambda t: (0, 0, 0)),
                pl.BlockSpec((n_layers, b_tile, d_pad), lambda t: (0, 0, 0)),
            ],
            out_specs=pl.BlockSpec((b_tile, d_pad), lambda t: (t, 0)),
        ),
        compiler_params=pltpu.CompilerParams(
            dimension_semantics=("parallel",)),
    )(x_pad, w_slab, b_slab)

    mean = out[:B, :output_size]
    logvar = out[:B, output_size:2 * output_size]
    return mean, logvar


def init_params(key, input_size, output_size, hidden_size, hidden_count):
    """Deterministic synthetic parameters matching FFLayers' layer shapes."""
    sizes = (
        [(input_size, hidden_size)]
        + [(hidden_size, hidden_size)] * (hidden_count - 1)
        + [(hidden_size, output_size * 2)]
    )
    params = []
    for (din, dout) in sizes:
        key, kw, kb = jax.random.split(key, 3)
        bound = 1.0 / jnp.sqrt(din)  # torch.nn.Linear default init scale
        w = jax.random.uniform(kw, (din, dout), jnp.float32, -bound, bound)
        b = jax.random.uniform(kb, (dout,), jnp.float32, -bound, bound)
        params.append((w, b))
    return params


if __name__ == "__main__":
    # Small shapes consistent with the module's forward.
    batch = 8
    input_size = 32
    hidden_size = 32
    output_size = 4
    hidden_count = 2

    key = jax.random.PRNGKey(0)
    key, kx = jax.random.split(key)
    x = jax.random.normal(kx, (batch, input_size), jnp.float32)

    params = init_params(key, input_size, output_size, hidden_size, hidden_count)

    mean, logvar = net_forward(params, x, output_size=output_size)
    jax.block_until_ready((mean, logvar))

    assert mean.shape == (batch, output_size)
    assert logvar.shape == (batch, output_size)

    # Sanity check against a pure-JAX reference of the same math.
    h_ref = x
    for idx, (w, b) in enumerate(params):
        h_ref = h_ref @ w + b
        if idx != len(params) - 1:
            h_ref = jnp.maximum(h_ref, 0.0)
    ref_mean = h_ref[:, :output_size]
    ref_logvar = h_ref[:, output_size:]
    assert jnp.allclose(mean, ref_mean, atol=1e-5, rtol=1e-5)
    assert jnp.allclose(logvar, ref_logvar, atol=1e-5, rtol=1e-5)

    print("KERNEL_OK")
</pallas_src>

<mosaic_0001>
module attributes {stable_mosaic.version = 11 : i64} {
  func.func @_fused_mlp_kernel(%arg0: i32, %arg1: memref<8x128xf32, #tpu.memory_space<vmem>>, %arg2: memref<3x128x128xf32, #tpu.memory_space<vmem>>, %arg3: memref<3x8x128xf32, #tpu.memory_space<vmem>>, %arg4: memref<8x128xf32, #tpu.memory_space<vmem>>) attributes {dimension_semantics = [#tpu.dimension_semantics<parallel>], iteration_bounds = array<i64: 1>, scalar_prefetch = 0 : i64, scratch_operands = 0 : i64, tpu.core_type = #tpu.core_type<tc>, window_params = [{transform_indices = @transform_0, window_bounds = array<i64: 8, 128>}, {pipeline_mode = #tpu.pipeline_mode<synchronous>, transform_indices = @transform_1, window_bounds = array<i64: 3, 128, 128>}, {pipeline_mode = #tpu.pipeline_mode<synchronous>, transform_indices = @transform_2, window_bounds = array<i64: 3, 8, 128>}, {transform_indices = @transform_3, window_bounds = array<i64: 8, 128>}]} {
    %c0 = arith.constant 0 : index
    %c0_0 = arith.constant 0 : index
    %0 = vector.load %arg1[%c0, %c0_0] : memref<8x128xf32, #tpu.memory_space<vmem>>, vector<8x128xf32>
    %c0_1 = arith.constant 0 : index
    %c0_2 = arith.constant 0 : index
    %c0_3 = arith.constant 0 : index
    %1 = vector.load %arg2[%c0_1, %c0_2, %c0_3] : memref<3x128x128xf32, #tpu.memory_space<vmem>>, vector<1x128x128xf32>
    %2 = vector.shape_cast %1 : vector<1x128x128xf32> to vector<128x128xf32>
    %cst = arith.constant dense<0.000000e+00> : vector<8x128xf32>
    %3 = tpu.matmul %0, %2, %cst {dimension_numbers = #tpu.dot_dimension_numbers<[1], [0], [0], [1], [0, 0, 1, 1], [], []>} : vector<8x128xf32>, vector<128x128xf32>, vector<8x128xf32> -> vector<8x128xf32>
    %c0_4 = arith.constant 0 : index
    %c0_5 = arith.constant 0 : index
    %c0_6 = arith.constant 0 : index
    %4 = vector.load %arg3[%c0_4, %c0_5, %c0_6] : memref<3x8x128xf32, #tpu.memory_space<vmem>>, vector<1x8x128xf32>
    %5 = vector.shape_cast %4 : vector<1x8x128xf32> to vector<8x128xf32>
    %6 = arith.addf %3, %5 : vector<8x128xf32>
    %cst_7 = arith.constant 0.000000e+00 : f32
    %7 = vector.broadcast %cst_7 : f32 to vector<8x128xf32>
    %8 = arith.maximumf %6, %7 : vector<8x128xf32>
    %c1 = arith.constant 1 : index
    %c0_8 = arith.constant 0 : index
    %c0_9 = arith.constant 0 : index
    %9 = vector.load %arg2[%c1, %c0_8, %c0_9] : memref<3x128x128xf32, #tpu.memory_space<vmem>>, vector<1x128x128xf32>
    %10 = vector.shape_cast %9 : vector<1x128x128xf32> to vector<128x128xf32>
    %cst_10 = arith.constant dense<0.000000e+00> : vector<8x128xf32>
    %11 = tpu.matmul %8, %10, %cst_10 {dimension_numbers = #tpu.dot_dimension_numbers<[1], [0], [0], [1], [0, 0, 1, 1], [], []>} : vector<8x128xf32>, vector<128x128xf32>, vector<8x128xf32> -> vector<8x128xf32>
    %c1_11 = arith.constant 1 : index
    %c0_12 = arith.constant 0 : index
    %c0_13 = arith.constant 0 : index
    %12 = vector.load %arg3[%c1_11, %c0_12, %c0_13] : memref<3x8x128xf32, #tpu.memory_space<vmem>>, vector<1x8x128xf32>
    %13 = vector.shape_cast %12 : vector<1x8x128xf32> to vector<8x128xf32>
    %14 = arith.addf %11, %13 : vector<8x128xf32>
    %cst_14 = arith.constant 0.000000e+00 : f32
    %15 = vector.broadcast %cst_14 : f32 to vector<8x128xf32>
    %16 = arith.maximumf %14, %15 : vector<8x128xf32>
    %c2 = arith.constant 2 : index
    %c0_15 = arith.constant 0 : index
    %c0_16 = arith.constant 0 : index
    %17 = vector.load %arg2[%c2, %c0_15, %c0_16] : memref<3x128x128xf32, #tpu.memory_space<vmem>>, vector<1x128x128xf32>
    %18 = vector.shape_cast %17 : vector<1x128x128xf32> to vector<128x128xf32>
    %cst_17 = arith.constant dense<0.000000e+00> : vector<8x128xf32>
    %19 = tpu.matmul %16, %18, %cst_17 {dimension_numbers = #tpu.dot_dimension_numbers<[1], [0], [0], [1], [0, 0, 1, 1], [], []>} : vector<8x128xf32>, vector<128x128xf32>, vector<8x128xf32> -> vector<8x128xf32>
    %c2_18 = arith.constant 2 : index
    %c0_19 = arith.constant 0 : index
    %c0_20 = arith.constant 0 : index
    %20 = vector.load %arg3[%c2_18, %c0_19, %c0_20] : memref<3x8x128xf32, #tpu.memory_space<vmem>>, vector<1x8x128xf32>
    %21 = vector.shape_cast %20 : vector<1x8x128xf32> to vector<8x128xf32>
    %22 = arith.addf %19, %21 : vector<8x128xf32>
    %c0_21 = arith.constant 0 : index
    %c0_22 = arith.constant 0 : index
    %23 = vector.load %arg4[%c0_21, %c0_22] : memref<8x128xf32, #tpu.memory_space<vmem>>, vector<8x128xf32>
    tpu.vector_store %arg4[%c0_21, %c0_22], %22 {strides = array<i32>} : memref<8x128xf32, #tpu.memory_space<vmem>>, vector<8x128xf32>,
    return
  }
  func.func @transform_0(%arg0: i32) -> (i32, i32) {
    %c0_i32 = arith.constant 0 : i32
    %c0_i32_0 = arith.constant 0 : i32
    return %arg0, %c0_i32 : i32, i32
  }
  func.func @transform_1(%arg0: i32) -> (i32, i32, i32) {
    %c0_i32 = arith.constant 0 : i32
    %c0_i32_0 = arith.constant 0 : i32
    %c0_i32_1 = arith.constant 0 : i32
    %c0_i32_2 = arith.constant 0 : i32
    return %c0_i32, %c0_i32_0, %c0_i32_1 : i32, i32, i32
  }
  func.func @transform_2(%arg0: i32) -> (i32, i32, i32) {
    %c0_i32 = arith.constant 0 : i32
    %c0_i32_0 = arith.constant 0 : i32
    %c0_i32_1 = arith.constant 0 : i32
    %c0_i32_2 = arith.constant 0 : i32
    return %c0_i32, %c0_i32_0, %c0_i32_1 : i32, i32, i32
  }
  func.func @transform_3(%arg0: i32) -> (i32, i32) {
    %c0_i32 = arith.constant 0 : i32
    %c0_i32_0 = arith.constant 0 : i32
    return %arg0, %c0_i32 : i32, i32
  }
}

</mosaic_0001>

<llo_original>
// kernel: net_forward.1
$region0: #{net_forward.1}
  #allocation0 [shape = 'u32[]', space=smem, size = 0x4, offset = 0x4, fixed_abs, tag = 'smem constant byte address 0x4 - core index']
  #allocation1 [shape = 'u32[144,128]{1,0:T(1,128)}', space=vmem, size = 0x12000, scoped, tag = 'internal scratch']
  %s0 = inlined_call_operand.vmem [shape: f32[8,128], index: 0, kind: input, shape index: {}]
  %s1 = inlined_call_operand.vmem [shape: f32[3,128,128], index: 1, kind: input, shape index: {}]
  %s2 = inlined_call_operand.vmem [shape: f32[3,8,128], index: 2, kind: input, shape index: {}]
  %s3 = inlined_call_operand.vmem [shape: f32[8,128], index: 3, kind: output, shape index: {}]
  %s4 = sld [smem:[#allocation0]]
  $region22: #{net_forward.1} parent=0
    _
  %s6 = ssub.s32 1, %s4
  %s7 = scalar_select 0, %s6, %s4
  // Predicated region
  $region2: #{net_forward.1} parent=0 // pred_check
    _
  $region3: #{net_forward.1} parent=0 // pred_check_branch
    %9 = sbr.rel (0) target = $region5
  $region4: #{net_forward.1} parent=0 // pred_region
    _
  $region5: #{net_forward.1} parent=0 // pred_fallthru
    _
  // Predicated region
  $region6: #{net_forward.1} parent=0 // pred_check
    _
  $region7: #{net_forward.1} parent=0 // pred_check_branch
    %11 = sbr.rel (0) target = $region9
  $region8: #{net_forward.1} parent=0 // pred_region
    _
  $region9: #{net_forward.1} parent=0 // pred_fallthru
    _
  // Predicated region
  $region10: #{net_forward.1} parent=0 // pred_check
    _
  $region11: #{net_forward.1} parent=0 // pred_check_branch
    %13 = sbr.rel (0) target = $region13
  $region12: #{net_forward.1} parent=0 // pred_region
    _
  $region13: #{net_forward.1} parent=0 // pred_fallthru
    _
  %v14 = vld [vmem:[%s0] sm:$0xff]
  %v15 = vld [vmem:[%s1] sm:$0xff]
  %v16 = vld [vmem:[%s1 + $0x8] sm:$0xff]
  %v17 = vld [vmem:[%s1 + $0x10] sm:$0xff]
  %v18 = vld [vmem:[%s1 + $0x18] sm:$0xff]
  %v19 = vld [vmem:[%s1 + $0x20] sm:$0xff]
  %v20 = vld [vmem:[%s1 + $0x28] sm:$0xff]
  %v21 = vld [vmem:[%s1 + $0x30] sm:$0xff]
  %v22 = vld [vmem:[%s1 + $0x38] sm:$0xff]
  %v23 = vld [vmem:[%s1 + $0x40] sm:$0xff]
  %v24 = vld [vmem:[%s1 + $0x48] sm:$0xff]
  %v25 = vld [vmem:[%s1 + $0x50] sm:$0xff]
  %v26 = vld [vmem:[%s1 + $0x58] sm:$0xff]
  %v27 = vld [vmem:[%s1 + $0x60] sm:$0xff]
  %v28 = vld [vmem:[%s1 + $0x68] sm:$0xff]
  %v29 = vld [vmem:[%s1 + $0x70] sm:$0xff]
  %v30 = vld [vmem:[%s1 + $0x78] sm:$0xff]
  %v31 = vld [vmem:[%s2] sm:$0xff]
  %32 = vmatprep.subr.mxu0 0.0
  %33 = vmatpush1.msra.mxu0 %v15
  %34 = vmatprep.subr.mxu0 0.0
  %35 = vmatpush1.msra.mxu0 %v16
  %36 = vmatprep.subr.mxu0 0.0
  %37 = vmatpush1.msra.mxu0 %v17
  %38 = vmatprep.subr.mxu0 0.0
  %39 = vmatpush1.msra.mxu0 %v18
  %40 = vmatprep.subr.mxu0 0.0
  %41 = vmatpush1.msra.mxu0 %v19
  %42 = vmatprep.subr.mxu0 0.0
  %43 = vmatpush1.msra.mxu0 %v20
  %44 = vmatprep.subr.mxu0 0.0
  %45 = vmatpush1.msra.mxu0 %v21
  %46 = vmatprep.subr.mxu0 0.0
  %47 = vmatpush1.msra.mxu0 %v22
  %48 = vmatprep.subr.mxu0 0.0
  %49 = vmatpush1.msra.mxu0 %v23
  %50 = vmatprep.subr.mxu0 0.0
  %51 = vmatpush1.msra.mxu0 %v24
  %52 = vmatprep.subr.mxu0 0.0
  %53 = vmatpush1.msra.mxu0 %v25
  %54 = vmatprep.subr.mxu0 0.0
  %55 = vmatpush1.msra.mxu0 %v26
  %56 = vmatprep.subr.mxu0 0.0
  %57 = vmatpush1.msra.mxu0 %v27
  %58 = vmatprep.subr.mxu0 0.0
  %59 = vmatpush1.msra.mxu0 %v28
  %60 = vmatprep.subr.mxu0 0.0
  %61 = vmatpush1.msra.mxu0 %v29
  %62 = vmatprep.subr.mxu0 0.0
  %63 = vmatpush1.msra.mxu0 %v30
  %64 = vmatprep.subr.mxu0 0.0
  %65 = vmatpush1.msra.mxu0 0.0
  %66 = vmatprep.subr.mxu0 0.0
  %67 = vmatpush1.msra.mxu0 0.0
  %68 = vmatprep.subr.mxu0 0.0
  %69 = vmatpush1.msra.mxu0 0.0
  %70 = vmatprep.subr.mxu0 0.0
  %71 = vmatpush1.msra.mxu0 0.0
  %72 = vmatprep.subr.mxu0 0.0
  %73 = vmatpush1.msra.mxu0 0.0
  %74 = vmatprep.subr.mxu0 0.0
  %75 = vmatpush1.msra.mxu0 0.0
  %76 = vmatprep.subr.mxu0 0.0
  %77 = vmatpush1.msra.mxu0 0.0
  %78 = vmatprep.subr.mxu0 0.0
  %79 = vmatpush1.msra.mxu0 0.0
  %80 = vmatprep.subr.mxu0 0.0
  %81 = vmatpush1.msra.mxu0 0.0
  %82 = vmatprep.subr.mxu0 0.0
  %83 = vmatpush1.msra.mxu0 0.0
  %84 = vmatprep.subr.mxu0 0.0
  %85 = vmatpush1.msra.mxu0 0.0
  %86 = vmatprep.subr.mxu0 0.0
  %87 = vmatpush1.msra.mxu0 0.0
  %88 = vmatprep.subr.mxu0 0.0
  %89 = vmatpush1.msra.mxu0 0.0
  %90 = vmatprep.subr.mxu0 0.0
  %91 = vmatpush1.msra.mxu0 0.0
  %92 = vmatprep.subr.mxu0 0.0
  %93 = vmatpush1.msra.mxu0 0.0
  %94 = vmatprep.subr.mxu0 0.0
  %95 = vmatpush1.msra.mxu0 0.0
  %96 = vmatprep.mubr.f32.mxu0 0.0
  %97 = vmatmul.mubr.f32.gmra.mrb[0].mxu0 %v14
  %v98 = vpop.f32.mrb[0].mxu0
  %v99 = vadd.f32 %v31, %v98
  %v100 = vpop.f32.mrb[0].mxu0
  %101 = vdwg.mxu0
  %v102 = vmax.f32 %v99, 0.0
  %s103 = scalar_lea.vmem %s1, 128
  %v104 = vld [vmem:[%s103] sm:$0xff]
  %v105 = vld [vmem:[%s103 + $0x8] sm:$0xff]
  %v106 = vld [vmem:[%s103 + $0x10] sm:$0xff]
  %v107 = vld [vmem:[%s103 + $0x18] sm:$0xff]
  %v108 = vld [vmem:[%s103 + $0x20] sm:$0xff]
  %v109 = vld [vmem:[%s103 + $0x28] sm:$0xff]
  %v110 = vld [vmem:[%s103 + $0x30] sm:$0xff]
  %v111 = vld [vmem:[%s103 + $0x38] sm:$0xff]
  %v112 = vld [vmem:[%s103 + $0x40] sm:$0xff]
  %v113 = vld [vmem:[%s103 + $0x48] sm:$0xff]
  %v114 = vld [vmem:[%s103 + $0x50] sm:$0xff]
  %v115 = vld [vmem:[%s103 + $0x58] sm:$0xff]
  %v116 = vld [vmem:[%s103 + $0x60] sm:$0xff]
  %v117 = vld [vmem:[%s103 + $0x68] sm:$0xff]
  %v118 = vld [vmem:[%s103 + $0x70] sm:$0xff]
  %v119 = vld [vmem:[%s103 + $0x78] sm:$0xff]
  %s120 = scalar_lea.vmem %s2, 8
  %v121 = vld [vmem:[%s120] sm:$0xff]
  %122 = vmatprep.subr.mxu0 0.0
  %123 = vmatpush1.msra.mxu0 %v104
  %124 = vmatprep.subr.mxu0 0.0
  %125 = vmatpush1.msra.mxu0 %v105
  %126 = vmatprep.subr.mxu0 0.0
  %127 = vmatpush1.msra.mxu0 %v106
  %128 = vmatprep.subr.mxu0 0.0
  %129 = vmatpush1.msra.mxu0 %v107
  %130 = vmatprep.subr.mxu0 0.0
  %131 = vmatpush1.msra.mxu0 %v108
  %132 = vmatprep.subr.mxu0 0.0
  %133 = vmatpush1.msra.mxu0 %v109
  %134 = vmatprep.subr.mxu0 0.0
  %135 = vmatpush1.msra.mxu0 %v110
  %136 = vmatprep.subr.mxu0 0.0
  %137 = vmatpush1.msra.mxu0 %v111
  %138 = vmatprep.subr.mxu0 0.0
  %139 = vmatpush1.msra.mxu0 %v112
  %140 = vmatprep.subr.mxu0 0.0
  %141 = vmatpush1.msra.mxu0 %v113
  %142 = vmatprep.subr.mxu0 0.0
  %143 = vmatpush1.msra.mxu0 %v114
  %144 = vmatprep.subr.mxu0 0.0
  %145 = vmatpush1.msra.mxu0 %v115
  %146 = vmatprep.subr.mxu0 0.0
  %147 = vmatpush1.msra.mxu0 %v116
  %148 = vmatprep.subr.mxu0 0.0
  %149 = vmatpush1.msra.mxu0 %v117
  %150 = vmatprep.subr.mxu0 0.0
  %151 = vmatpush1.msra.mxu0 %v118
  %152 = vmatprep.subr.mxu0 0.0
  %153 = vmatpush1.msra.mxu0 %v119
  %154 = vmatprep.subr.mxu0 0.0
  %155 = vmatpush1.msra.mxu0 0.0
  %156 = vmatprep.subr.mxu0 0.0
  %157 = vmatpush1.msra.mxu0 0.0
  %158 = vmatprep.subr.mxu0 0.0
  %159 = vmatpush1.msra.mxu0 0.0
  %160 = vmatprep.subr.mxu0 0.0
  %161 = vmatpush1.msra.mxu0 0.0
  %162 = vmatprep.subr.mxu0 0.0
  %163 = vmatpush1.msra.mxu0 0.0
  %164 = vmatprep.subr.mxu0 0.0
  %165 = vmatpush1.msra.mxu0 0.0
  %166 = vmatprep.subr.mxu0 0.0
  %167 = vmatpush1.msra.mxu0 0.0
  %168 = vmatprep.subr.mxu0 0.0
  %169 = vmatpush1.msra.mxu0 0.0
  %170 = vmatprep.subr.mxu0 0.0
  %171 = vmatpush1.msra.mxu0 0.0
  %172 = vmatprep.subr.mxu0 0.0
  %173 = vmatpush1.msra.mxu0 0.0
  %174 = vmatprep.subr.mxu0 0.0
  %175 = vmatpush1.msra.mxu0 0.0
  %176 = vmatprep.subr.mxu0 0.0
  %177 = vmatpush1.msra.mxu0 0.0
  %178 = vmatprep.subr.mxu0 0.0
  %179 = vmatpush1.msra.mxu0 0.0
  %180 = vmatprep.subr.mxu0 0.0
  %181 = vmatpush1.msra.mxu0 0.0
  %182 = vmatprep.subr.mxu0 0.0
  %183 = vmatpush1.msra.mxu0 0.0
  %184 = vmatprep.subr.mxu0 0.0
  %185 = vmatpush1.msra.mxu0 0.0
  %186 = vmatprep.mubr.f32.mxu0 0.0
  %187 = vmatmul.mubr.f32.gmra.mrb[0].mxu0 %v102
  %v188 = vpop.f32.mrb[0].mxu0
  %v189 = vadd.f32 %v121, %v188
  %v190 = vpop.f32.mrb[0].mxu0
  %191 = vdwg.mxu0
  %v192 = vmax.f32 %v189, 0.0
  %s193 = scalar_lea.vmem %s1, 256
  %v194 = vld [vmem:[%s193] sm:$0xff]
  %v195 = vld [vmem:[%s193 + $0x8] sm:$0xff]
  %v196 = vld [vmem:[%s193 + $0x10] sm:$0xff]
  %v197 = vld [vmem:[%s193 + $0x18] sm:$0xff]
  %v198 = vld [vmem:[%s193 + $0x20] sm:$0xff]
  %v199 = vld [vmem:[%s193 + $0x28] sm:$0xff]
  %v200 = vld [vmem:[%s193 + $0x30] sm:$0xff]
  %v201 = vld [vmem:[%s193 + $0x38] sm:$0xff]
  %v202 = vld [vmem:[%s193 + $0x40] sm:$0xff]
  %v203 = vld [vmem:[%s193 + $0x48] sm:$0xff]
  %v204 = vld [vmem:[%s193 + $0x50] sm:$0xff]
  %v205 = vld [vmem:[%s193 + $0x58] sm:$0xff]
  %v206 = vld [vmem:[%s193 + $0x60] sm:$0xff]
  %v207 = vld [vmem:[%s193 + $0x68] sm:$0xff]
  %v208 = vld [vmem:[%s193 + $0x70] sm:$0xff]
  %v209 = vld [vmem:[%s193 + $0x78] sm:$0xff]
  %s210 = scalar_lea.vmem %s2, 16
  %v211 = vld [vmem:[%s210] sm:$0xff]
  %212 = vmatprep.subr.mxu0 0.0
  %213 = vmatpush1.msra.mxu0 %v194
  %214 = vmatprep.subr.mxu0 0.0
  %215 = vmatpush1.msra.mxu0 %v195
  %216 = vmatprep.subr.mxu0 0.0
  %217 = vmatpush1.msra.mxu0 %v196
  %218 = vmatprep.subr.mxu0 0.0
  %219 = vmatpush1.msra.mxu0 %v197
  %220 = vmatprep.subr.mxu0 0.0
  %221 = vmatpush1.msra.mxu0 %v198
  %222 = vmatprep.subr.mxu0 0.0
  %223 = vmatpush1.msra.mxu0 %v199
  %224 = vmatprep.subr.mxu0 0.0
  %225 = vmatpush1.msra.mxu0 %v200
  %226 = vmatprep.subr.mxu0 0.0
  %227 = vmatpush1.msra.mxu0 %v201
  %228 = vmatprep.subr.mxu0 0.0
  %229 = vmatpush1.msra.mxu0 %v202
  %230 = vmatprep.subr.mxu0 0.0
  %231 = vmatpush1.msra.mxu0 %v203
  %232 = vmatprep.subr.mxu0 0.0
  %233 = vmatpush1.msra.mxu0 %v204
  %234 = vmatprep.subr.mxu0 0.0
  %235 = vmatpush1.msra.mxu0 %v205
  %236 = vmatprep.subr.mxu0 0.0
  %237 = vmatpush1.msra.mxu0 %v206
  %238 = vmatprep.subr.mxu0 0.0
  %239 = vmatpush1.msra.mxu0 %v207
  %240 = vmatprep.subr.mxu0 0.0
  %241 = vmatpush1.msra.mxu0 %v208
  %242 = vmatprep.subr.mxu0 0.0
  %243 = vmatpush1.msra.mxu0 %v209
  %244 = vmatprep.subr.mxu0 0.0
  %245 = vmatpush1.msra.mxu0 0.0
  %246 = vmatprep.subr.mxu0 0.0
  %247 = vmatpush1.msra.mxu0 0.0
  %248 = vmatprep.subr.mxu0 0.0
  %249 = vmatpush1.msra.mxu0 0.0
  %250 = vmatprep.subr.mxu0 0.0
  %251 = vmatpush1.msra.mxu0 0.0
  %252 = vmatprep.subr.mxu0 0.0
  %253 = vmatpush1.msra.mxu0 0.0
  %254 = vmatprep.subr.mxu0 0.0
  %255 = vmatpush1.msra.mxu0 0.0
  %256 = vmatprep.subr.mxu0 0.0
  %257 = vmatpush1.msra.mxu0 0.0
  %258 = vmatprep.subr.mxu0 0.0
  %259 = vmatpush1.msra.mxu0 0.0
  %260 = vmatprep.subr.mxu0 0.0
  %261 = vmatpush1.msra.mxu0 0.0
  %262 = vmatprep.subr.mxu0 0.0
  %263 = vmatpush1.msra.mxu0 0.0
  %264 = vmatprep.subr.mxu0 0.0
  %265 = vmatpush1.msra.mxu0 0.0
  %266 = vmatprep.subr.mxu0 0.0
  %267 = vmatpush1.msra.mxu0 0.0
  %268 = vmatprep.subr.mxu0 0.0
  %269 = vmatpush1.msra.mxu0 0.0
  %270 = vmatprep.subr.mxu0 0.0
  %271 = vmatpush1.msra.mxu0 0.0
  %272 = vmatprep.subr.mxu0 0.0
  %273 = vmatpush1.msra.mxu0 0.0
  %274 = vmatprep.subr.mxu0 0.0
  %275 = vmatpush1.msra.mxu0 0.0
  %276 = vmatprep.mubr.f32.mxu0 0.0
  %277 = vmatmul.mubr.f32.gmra.mrb[0].mxu0 %v192
  %v278 = vpop.f32.mrb[0].mxu0
  %v279 = vadd.f32 %v211, %v278
  %v280 = vpop.f32.mrb[0].mxu0
  %281 = vdwg.mxu0
  %282 = vst [vmem:[%s3] sm:$0xff] %v279
  // Predicated region
  $region14: #{net_forward.1} parent=0 // pred_check
    _
  $region15: #{net_forward.1} parent=0 // pred_check_branch
    %284 = sbr.rel (0) target = $region17
  $region16: #{net_forward.1} parent=0 // pred_region
    _
  $region17: #{net_forward.1} parent=0 // pred_fallthru
    _
  // Predicated region
  $region18: #{net_forward.1} parent=0 // pred_check
    _
  $region19: #{net_forward.1} parent=0 // pred_check_branch
    %286 = sbr.rel (0) target = $region21
  $region20: #{net_forward.1} parent=0 // pred_region
    _
  $region21: #{net_forward.1} parent=0 // pred_fallthru
    _

</llo_original>
